<compile_context>
chip_gen: v6e
topology: v6e:2x2x1
jax: 0.10.0
libtpu: 0.0.40
codegen_flags: <defaults>
</compile_context>

<pallas_src>
import functools

import jax
import jax.numpy as jnp
from jax.experimental import pallas as pl
from jax.experimental.pallas import tpu as pltpu


# ----------------------- flat (lane-dense, MXU-only) path -------------------- #
def _fused_kernel_flat(x_ref, b_ref, o_ref, *,
                       KH, KW, dilation, row_tile, Wo, Cin, Cout):
    # x_ref : (1, Hp, Wp*Cin)               channel-minor flattened onto lanes
    # b_ref : (KH*KW, Wo*Cin, Wo*Cout)      per-tap block-diagonal folded weights
    # o_ref : (1, row_tile, Wo*Cout)        lane-dense output block
    i = pl.program_id(1)
    row0 = pl.multiple_of(i * row_tile, row_tile)

    acc = jnp.zeros((row_tile, Wo * Cout), dtype=jnp.float32)
    for kh in range(KH):
        for kw in range(KW):
            t = kh * KW + kw
            tap = x_ref[0,
                        pl.ds(row0 + kh * dilation, row_tile),
                        pl.ds(kw * dilation * Cin, Wo * Cin)]
            acc = acc + jnp.dot(tap.astype(b_ref.dtype), b_ref[t],
                                preferred_element_type=jnp.float32)
    o_ref[0] = acc.astype(o_ref.dtype)


# ------------------- fallback (channels-on-lanes) path ----------------------- #
def _fused_kernel_cl(x_ref, wdw_ref, wpw_ref, o_ref, *,
                     KH, KW, stride, dilation, row_tile, Wo, Cin, Cout):
    # x_ref  : (1, Hp, Wp, Cin)
    # wdw_ref: (KH*KW, Cin)     depthwise weights (f32, cast hoisted to wrapper)
    # wpw_ref: (Cin, Cout)      folded low-rank pointwise weight (compute dtype)
    # o_ref  : (1, row_tile, Wo, Cout)
    i = pl.program_id(1)
    row_step = row_tile * stride
    row0 = pl.multiple_of(i * row_step, row_step)

    wdw = wdw_ref[...]
    acc = jnp.zeros((row_tile, Wo, Cin), dtype=jnp.float32)
    for kh in range(KH):
        for kw in range(KW):
            if stride == 1:
                tap = x_ref[0,
                            pl.ds(row0 + kh * dilation, row_tile),
                            pl.ds(kw * dilation, Wo), :]
            else:
                # strided ref loads per tap (no full-width window + value slicing)
                tap = x_ref[0,
                            pl.ds(row0 + kh * dilation, row_tile, stride),
                            pl.ds(kw * dilation, Wo, stride), :]
            acc = acc + tap.astype(jnp.float32) * wdw[kh * KW + kw]

    lhs = acc.reshape(row_tile * Wo, Cin).astype(wpw_ref.dtype)
    y = jnp.dot(lhs, wpw_ref[...], preferred_element_type=jnp.float32)
    o_ref[0] = y.reshape(row_tile, Wo, Cout).astype(o_ref.dtype)


# ------------------------------- tiling helper -------------------------------- #
def _pick_row_tile(Ho, Wo, Cin, Cout, itemsize):
    """Multiple-of-8 row tile (or all of Ho) targeting row_tile*Wo >= 256 while
    keeping the f32 accumulator <= 128 KiB and the double-buffered output block
    <= 8 MiB (per-grid-step overhead ~0.35us -> prefer bigger tiles)."""
    if Ho <= 8:
        return Ho
    cmax = max(Cin, Cout)
    best, rt = 8, 8
    while rt <= Ho:
        acc_bytes = rt * Wo * cmax * 4
        out_bytes = 2 * rt * Wo * Cout * itemsize
        if acc_bytes > (128 << 10) or out_bytes > (8 << 20):
            break
        best = rt
        if rt * Wo >= 256:
            break
        rt += 8
    return best


def _vmem_limit(need_bytes):
    try:
        cap = int(pltpu.get_tpu_info().vmem_capacity_bytes)
    except Exception:
        cap = 64 << 20        # conservative (v7x physical VMEM per TC)
    return int(min(max(need_bytes, 8 << 20), int(0.8 * cap)))


# --------------------------------- wrapper ------------------------------------ #
def separable_lowrank_conv2d(x_nchw, w_dw_oihw, w_red_oihw, w_exp_oihw, *,
                             stride, padding, dilation=1, row_tile=None):
    """Matches SeparableLowRankConv2d.forward (NCHW in, NCHW out)."""
    N, Cin, H, W = (int(d) for d in x_nchw.shape)
    KH, KW = int(w_dw_oihw.shape[2]), int(w_dw_oihw.shape[3])
    Cout = int(w_exp_oihw.shape[0])

    Ho = (H + 2 * padding - dilation * (KH - 1) - 1) // stride + 1
    Wo = (W + 2 * padding - dilation * (KW - 1) - 1) // stride + 1
    itemsize = jnp.dtype(x_nchw.dtype).itemsize

    # ---- row tiling: multiple of 8 sublanes, Ho padded to a whole grid ----
    if row_tile is None:
        row_tile = _pick_row_tile(Ho, Wo, Cin, Cout, itemsize)
    row_tile = max(1, min(int(row_tile), Ho))
    if row_tile < Ho and row_tile % 8 != 0:
        row_tile = min(Ho, ((row_tile + 7) // 8) * 8)
    n_row_tiles = int(pl.cdiv(Ho, row_tile))
    Ho_pad = n_row_tiles * row_tile

    # ---- layout prep (NCHW / OIHW -> NHWC, pad rows for the padded grid) ----
    x_nhwc = jnp.transpose(x_nchw, (0, 2, 3, 1))                   # (N,H,W,Cin)
    Hp_needed = (Ho_pad - 1) * stride + dilation * (KH - 1) + 1
    pad_bottom = padding + max(0, Hp_needed - (H + 2 * padding))
    x_pad = jnp.pad(x_nhwc, ((0, 0), (padding, pad_bottom),
                             (padding, padding), (0, 0)))
    Hp, Wp = int(x_pad.shape[1]), int(x_pad.shape[2])

    # ---- weights (casts hoisted; MXU operands in the model compute dtype) ----
    compute_dtype = jnp.bfloat16 if x_nchw.dtype == jnp.bfloat16 else jnp.float32
    w_dw = jnp.transpose(w_dw_oihw[:, 0].reshape(Cin, KH * KW),
                         (1, 0)).astype(jnp.float32)               # (KH*KW, Cin)
    w_reduce = w_red_oihw[:, :, 0, 0].astype(jnp.float32)          # (R, Cin)
    w_expand = w_exp_oihw[:, :, 0, 0].astype(jnp.float32)          # (Cout, R)
    w_fold32 = jnp.transpose(jnp.dot(w_expand, w_reduce))          # (Cin, Cout)

    cdt_size = jnp.dtype(compute_dtype).itemsize
    b_bytes = KH * KW * (Wo * Cin) * (Wo * Cout) * cdt_size
    use_flat = (stride == 1) and (b_bytes <= (2 << 20))

    hdr = 2 << 20                                                  # headroom
    common = dict(KH=KH, KW=KW, dilation=dilation,
                  row_tile=row_tile, Wo=Wo, Cin=Cin, Cout=Cout)

    if use_flat:
        # lane-dense path: x -> (N, Hp, Wp*Cin); per-tap block-diagonal weights
        x_in = x_pad.reshape(N, Hp, Wp * Cin)
        w_tap = w_dw[:, :, None] * w_fold32[None, :, :]            # (T,Cin,Cout)
        eye_w = jnp.eye(Wo, dtype=jnp.float32)
        b_mat = jnp.einsum('tio,wv->twivo', w_tap, eye_w)
        b_mat = b_mat.reshape(KH * KW, Wo * Cin, Wo * Cout).astype(compute_dtype)

        in_block = Hp * Wp * Cin * itemsize
        out_block = row_tile * Wo * Cout * itemsize
        acc_bytes = row_tile * Wo * Cout * 4
        need = 2 * in_block + 2 * b_bytes + 2 * out_block + acc_bytes + hdr

        kernel = functools.partial(_fused_kernel_flat, **common)
        out_flat = pl.pallas_call(
            kernel,
            out_shape=jax.ShapeDtypeStruct((N, Ho_pad, Wo * Cout), x_nchw.dtype),
            grid_spec=pltpu.PrefetchScalarGridSpec(
                num_scalar_prefetch=0,
                grid=(N, n_row_tiles),
                in_specs=[
                    pl.BlockSpec((1, Hp, Wp * Cin), lambda n, i: (n, 0, 0)),
                    pl.BlockSpec((KH * KW, Wo * Cin, Wo * Cout),
                                 lambda n, i: (0, 0, 0)),
                ],
                out_specs=pl.BlockSpec((1, row_tile, Wo * Cout),
                                       lambda n, i: (n, i, 0)),
            ),
            compiler_params=pltpu.CompilerParams(
                dimension_semantics=("parallel", "parallel"),
                vmem_limit_bytes=_vmem_limit(need),
            ),
        )(x_in, b_mat)
        out = out_flat[:, :Ho, :].reshape(N, Ho, Wo, Cout)
    else:
        # channels-on-lanes fallback (stride > 1, or block-diag weights too big)
        w_fold = w_fold32.astype(compute_dtype)
        in_block = Hp * Wp * Cin * itemsize
        out_block = row_tile * Wo * Cout * itemsize
        w_bytes = KH * KW * Cin * 4 + Cin * Cout * cdt_size
        acc_bytes = row_tile * Wo * Cin * 4
        need = 2 * in_block + 2 * w_bytes + 2 * out_block + acc_bytes + hdr

        kernel = functools.partial(_fused_kernel_cl, stride=stride, **common)
        out4 = pl.pallas_call(
            kernel,
            out_shape=jax.ShapeDtypeStruct((N, Ho_pad, Wo, Cout), x_nchw.dtype),
            grid_spec=pltpu.PrefetchScalarGridSpec(
                num_scalar_prefetch=0,
                grid=(N, n_row_tiles),
                in_specs=[
                    pl.BlockSpec((1, Hp, Wp, Cin), lambda n, i: (n, 0, 0, 0)),
                    pl.BlockSpec((KH * KW, Cin), lambda n, i: (0, 0)),
                    pl.BlockSpec((Cin, Cout), lambda n, i: (0, 0)),
                ],
                out_specs=pl.BlockSpec((1, row_tile, Wo, Cout),
                                       lambda n, i: (n, i, 0, 0)),
            ),
            compiler_params=pltpu.CompilerParams(
                dimension_semantics=("parallel", "parallel"),
                vmem_limit_bytes=_vmem_limit(need),
            ),
        )(x_pad, w_dw, w_fold)
        out = out4[:, :Ho]

    return jnp.transpose(out, (0, 3, 1, 2))                        # NHWC -> NCHW


# -------------------------------- reference ----------------------------------- #
def _reference(x_nchw, w_dw, w_red, w_exp, *, stride, padding, dilation):
    dn = ("NCHW", "OIHW", "NCHW")
    C = x_nchw.shape[1]
    y = jax.lax.conv_general_dilated(
        x_nchw, w_dw, window_strides=(stride, stride),
        padding=[(padding, padding), (padding, padding)],
        rhs_dilation=(dilation, dilation),
        dimension_numbers=dn, feature_group_count=C)
    y = jax.lax.conv_general_dilated(y, w_red, (1, 1), "VALID", dimension_numbers=dn)
    y = jax.lax.conv_general_dilated(y, w_exp, (1, 1), "VALID", dimension_numbers=dn)
    return y


if __name__ == "__main__":
    # Small config consistent with the PyTorch module's __init__.
    N, Cin, H, W = 2, 4, 16, 16
    Cout, K, stride, padding, dilation, rank = 8, 3, 1, 1, 1, 2

    key = jax.random.PRNGKey(0)
    kx, kd, kr, ke = jax.random.split(key, 4)
    x = jax.random.normal(kx, (N, Cin, H, W), dtype=jnp.float32)
    w_depthwise = jax.random.normal(kd, (Cin, 1, K, K), dtype=jnp.float32) * 0.1
    w_reduce = jax.random.normal(kr, (rank, Cin, 1, 1), dtype=jnp.float32) * 0.1
    w_expand = jax.random.normal(ke, (Cout, rank, 1, 1), dtype=jnp.float32) * 0.1

    # row_tile=8 -> grid (2, 2): exercises multi-row-tile offsets and the
    # lane-dense (Wo*Cout = 128) output store path.
    out = separable_lowrank_conv2d(x, w_depthwise, w_reduce, w_expand,
                                   stride=stride, padding=padding,
                                   dilation=dilation, row_tile=8)
    out = jax.block_until_ready(out)

    ref = _reference(x, w_depthwise, w_reduce, w_expand,
                     stride=stride, padding=padding, dilation=dilation)
    assert out.shape == ref.shape, (out.shape, ref.shape)
    assert jnp.allclose(out, ref, atol=1e-4, rtol=1e-3), "mismatch vs conv reference"

    print("KERNEL_OK")
</pallas_src>

<mosaic_0001>
module attributes {stable_mosaic.version = 11 : i64} {
  func.func @_fused_kernel_flat(%arg0: i32, %arg1: i32, %arg2: memref<1x18x72xf32, #tpu.memory_space<vmem>>, %arg3: memref<9x64x128xf32, #tpu.memory_space<vmem>>, %arg4: memref<1x8x128xf32, #tpu.memory_space<vmem>>) attributes {dimension_semantics = [#tpu.dimension_semantics<parallel>, #tpu.dimension_semantics<parallel>], iteration_bounds = array<i64: 2, 2>, scalar_prefetch = 0 : i64, scratch_operands = 0 : i64, tpu.core_type = #tpu.core_type<tc>, window_params = [{transform_indices = @transform_0, window_bounds = array<i64: 1, 18, 72>}, {pipeline_mode = #tpu.pipeline_mode<synchronous>, transform_indices = @transform_1, window_bounds = array<i64: 9, 64, 128>}, {transform_indices = @transform_2, window_bounds = array<i64: 1, 8, 128>}]} {
    %c8_i32 = arith.constant 8 : i32
    %0 = arith.muli %arg1, %c8_i32 : i32
    %1 = tpu.assume_multiple %0, 8 : i32
    %cst = arith.constant 0.000000e+00 : f32
    %2 = vector.broadcast %cst : f32 to vector<8x128xf32>
    %c0_i32 = arith.constant 0 : i32
    %3 = arith.addi %1, %c0_i32 : i32
    %c0 = arith.constant 0 : index
    %4 = arith.index_cast %3 : i32 to index
    %c0_0 = arith.constant 0 : index
    %5 = vector.load %arg2[%c0, %4, %c0_0] : memref<1x18x72xf32, #tpu.memory_space<vmem>>, vector<1x8x64xf32>
    %6 = vector.shape_cast %5 : vector<1x8x64xf32> to vector<8x64xf32>
    %c0_1 = arith.constant 0 : index
    %c0_2 = arith.constant 0 : index
    %c0_3 = arith.constant 0 : index
    %7 = vector.load %arg3[%c0_1, %c0_2, %c0_3] : memref<9x64x128xf32, #tpu.memory_space<vmem>>, vector<1x64x128xf32>
    %8 = vector.shape_cast %7 : vector<1x64x128xf32> to vector<64x128xf32>
    %cst_4 = arith.constant dense<0.000000e+00> : vector<8x128xf32>
    %9 = tpu.matmul %6, %8, %cst_4 {dimension_numbers = #tpu.dot_dimension_numbers<[1], [0], [0], [1], [0, 0, 1, 1], [], []>} : vector<8x64xf32>, vector<64x128xf32>, vector<8x128xf32> -> vector<8x128xf32>
    %10 = arith.addf %2, %9 : vector<8x128xf32>
    %c0_i32_5 = arith.constant 0 : i32
    %11 = arith.addi %1, %c0_i32_5 : i32
    %c0_6 = arith.constant 0 : index
    %12 = arith.index_cast %11 : i32 to index
    %c4 = arith.constant 4 : index
    %13 = vector.load %arg2[%c0_6, %12, %c4] : memref<1x18x72xf32, #tpu.memory_space<vmem>>, vector<1x8x64xf32>
    %14 = vector.shape_cast %13 : vector<1x8x64xf32> to vector<8x64xf32>
    %c1 = arith.constant 1 : index
    %c0_7 = arith.constant 0 : index
    %c0_8 = arith.constant 0 : index
    %15 = vector.load %arg3[%c1, %c0_7, %c0_8] : memref<9x64x128xf32, #tpu.memory_space<vmem>>, vector<1x64x128xf32>
    %16 = vector.shape_cast %15 : vector<1x64x128xf32> to vector<64x128xf32>
    %cst_9 = arith.constant dense<0.000000e+00> : vector<8x128xf32>
    %17 = tpu.matmul %14, %16, %cst_9 {dimension_numbers = #tpu.dot_dimension_numbers<[1], [0], [0], [1], [0, 0, 1, 1], [], []>} : vector<8x64xf32>, vector<64x128xf32>, vector<8x128xf32> -> vector<8x128xf32>
    %18 = arith.addf %10, %17 : vector<8x128xf32>
    %c0_i32_10 = arith.constant 0 : i32
    %19 = arith.addi %1, %c0_i32_10 : i32
    %c0_11 = arith.constant 0 : index
    %20 = arith.index_cast %19 : i32 to index
    %c8 = arith.constant 8 : index
    %21 = vector.load %arg2[%c0_11, %20, %c8] : memref<1x18x72xf32, #tpu.memory_space<vmem>>, vector<1x8x64xf32>
    %22 = vector.shape_cast %21 : vector<1x8x64xf32> to vector<8x64xf32>
    %c2 = arith.constant 2 : index
    %c0_12 = arith.constant 0 : index
    %c0_13 = arith.constant 0 : index
    %23 = vector.load %arg3[%c2, %c0_12, %c0_13] : memref<9x64x128xf32, #tpu.memory_space<vmem>>, vector<1x64x128xf32>
    %24 = vector.shape_cast %23 : vector<1x64x128xf32> to vector<64x128xf32>
    %cst_14 = arith.constant dense<0.000000e+00> : vector<8x128xf32>
    %25 = tpu.matmul %22, %24, %cst_14 {dimension_numbers = #tpu.dot_dimension_numbers<[1], [0], [0], [1], [0, 0, 1, 1], [], []>} : vector<8x64xf32>, vector<64x128xf32>, vector<8x128xf32> -> vector<8x128xf32>
    %26 = arith.addf %18, %25 : vector<8x128xf32>
    %c1_i32 = arith.constant 1 : i32
    %27 = arith.addi %1, %c1_i32 : i32
    %c0_15 = arith.constant 0 : index
    %28 = arith.index_cast %27 : i32 to index
    %c0_16 = arith.constant 0 : index
    %29 = vector.load %arg2[%c0_15, %28, %c0_16] : memref<1x18x72xf32, #tpu.memory_space<vmem>>, vector<1x8x64xf32>
    %30 = vector.shape_cast %29 : vector<1x8x64xf32> to vector<8x64xf32>
    %c3 = arith.constant 3 : index
    %c0_17 = arith.constant 0 : index
    %c0_18 = arith.constant 0 : index
    %31 = vector.load %arg3[%c3, %c0_17, %c0_18] : memref<9x64x128xf32, #tpu.memory_space<vmem>>, vector<1x64x128xf32>
    %32 = vector.shape_cast %31 : vector<1x64x128xf32> to vector<64x128xf32>
    %cst_19 = arith.constant dense<0.000000e+00> : vector<8x128xf32>
    %33 = tpu.matmul %30, %32, %cst_19 {dimension_numbers = #tpu.dot_dimension_numbers<[1], [0], [0], [1], [0, 0, 1, 1], [], []>} : vector<8x64xf32>, vector<64x128xf32>, vector<8x128xf32> -> vector<8x128xf32>
    %34 = arith.addf %26, %33 : vector<8x128xf32>
    %c1_i32_20 = arith.constant 1 : i32
    %35 = arith.addi %1, %c1_i32_20 : i32
    %c0_21 = arith.constant 0 : index
    %36 = arith.index_cast %35 : i32 to index
    %c4_22 = arith.constant 4 : index
    %37 = vector.load %arg2[%c0_21, %36, %c4_22] : memref<1x18x72xf32, #tpu.memory_space<vmem>>, vector<1x8x64xf32>
    %38 = vector.shape_cast %37 : vector<1x8x64xf32> to vector<8x64xf32>
    %c4_23 = arith.constant 4 : index
    %c0_24 = arith.constant 0 : index
    %c0_25 = arith.constant 0 : index
    %39 = vector.load %arg3[%c4_23, %c0_24, %c0_25] : memref<9x64x128xf32, #tpu.memory_space<vmem>>, vector<1x64x128xf32>
    %40 = vector.shape_cast %39 : vector<1x64x128xf32> to vector<64x128xf32>
    %cst_26 = arith.constant dense<0.000000e+00> : vector<8x128xf32>
    %41 = tpu.matmul %38, %40, %cst_26 {dimension_numbers = #tpu.dot_dimension_numbers<[1], [0], [0], [1], [0, 0, 1, 1], [], []>} : vector<8x64xf32>, vector<64x128xf32>, vector<8x128xf32> -> vector<8x128xf32>
    %42 = arith.addf %34, %41 : vector<8x128xf32>
    %c1_i32_27 = arith.constant 1 : i32
    %43 = arith.addi %1, %c1_i32_27 : i32
    %c0_28 = arith.constant 0 : index
    %44 = arith.index_cast %43 : i32 to index
    %c8_29 = arith.constant 8 : index
    %45 = vector.load %arg2[%c0_28, %44, %c8_29] : memref<1x18x72xf32, #tpu.memory_space<vmem>>, vector<1x8x64xf32>
    %46 = vector.shape_cast %45 : vector<1x8x64xf32> to vector<8x64xf32>
    %c5 = arith.constant 5 : index
    %c0_30 = arith.constant 0 : index
    %c0_31 = arith.constant 0 : index
    %47 = vector.load %arg3[%c5, %c0_30, %c0_31] : memref<9x64x128xf32, #tpu.memory_space<vmem>>, vector<1x64x128xf32>
    %48 = vector.shape_cast %47 : vector<1x64x128xf32> to vector<64x128xf32>
    %cst_32 = arith.constant dense<0.000000e+00> : vector<8x128xf32>
    %49 = tpu.matmul %46, %48, %cst_32 {dimension_numbers = #tpu.dot_dimension_numbers<[1], [0], [0], [1], [0, 0, 1, 1], [], []>} : vector<8x64xf32>, vector<64x128xf32>, vector<8x128xf32> -> vector<8x128xf32>
    %50 = arith.addf %42, %49 : vector<8x128xf32>
    %c2_i32 = arith.constant 2 : i32
    %51 = arith.addi %1, %c2_i32 : i32
    %c0_33 = arith.constant 0 : index
    %52 = arith.index_cast %51 : i32 to index
    %c0_34 = arith.constant 0 : index
    %53 = vector.load %arg2[%c0_33, %52, %c0_34] : memref<1x18x72xf32, #tpu.memory_space<vmem>>, vector<1x8x64xf32>
    %54 = vector.shape_cast %53 : vector<1x8x64xf32> to vector<8x64xf32>
    %c6 = arith.constant 6 : index
    %c0_35 = arith.constant 0 : index
    %c0_36 = arith.constant 0 : index
    %55 = vector.load %arg3[%c6, %c0_35, %c0_36] : memref<9x64x128xf32, #tpu.memory_space<vmem>>, vector<1x64x128xf32>
    %56 = vector.shape_cast %55 : vector<1x64x128xf32> to vector<64x128xf32>
    %cst_37 = arith.constant dense<0.000000e+00> : vector<8x128xf32>
    %57 = tpu.matmul %54, %56, %cst_37 {dimension_numbers = #tpu.dot_dimension_numbers<[1], [0], [0], [1], [0, 0, 1, 1], [], []>} : vector<8x64xf32>, vector<64x128xf32>, vector<8x128xf32> -> vector<8x128xf32>
    %58 = arith.addf %50, %57 : vector<8x128xf32>
    %c2_i32_38 = arith.constant 2 : i32
    %59 = arith.addi %1, %c2_i32_38 : i32
    %c0_39 = arith.constant 0 : index
    %60 = arith.index_cast %59 : i32 to index
    %c4_40 = arith.constant 4 : index
    %61 = vector.load %arg2[%c0_39, %60, %c4_40] : memref<1x18x72xf32, #tpu.memory_space<vmem>>, vector<1x8x64xf32>
    %62 = vector.shape_cast %61 : vector<1x8x64xf32> to vector<8x64xf32>
    %c7 = arith.constant 7 : index
    %c0_41 = arith.constant 0 : index
    %c0_42 = arith.constant 0 : index
    %63 = vector.load %arg3[%c7, %c0_41, %c0_42] : memref<9x64x128xf32, #tpu.memory_space<vmem>>, vector<1x64x128xf32>
    %64 = vector.shape_cast %63 : vector<1x64x128xf32> to vector<64x128xf32>
    %cst_43 = arith.constant dense<0.000000e+00> : vector<8x128xf32>
    %65 = tpu.matmul %62, %64, %cst_43 {dimension_numbers = #tpu.dot_dimension_numbers<[1], [0], [0], [1], [0, 0, 1, 1], [], []>} : vector<8x64xf32>, vector<64x128xf32>, vector<8x128xf32> -> vector<8x128xf32>
    %66 = arith.addf %58, %65 : vector<8x128xf32>
    %c2_i32_44 = arith.constant 2 : i32
    %67 = arith.addi %1, %c2_i32_44 : i32
    %c0_45 = arith.constant 0 : index
    %68 = arith.index_cast %67 : i32 to index
    %c8_46 = arith.constant 8 : index
    %69 = vector.load %arg2[%c0_45, %68, %c8_46] : memref<1x18x72xf32, #tpu.memory_space<vmem>>, vector<1x8x64xf32>
    %70 = vector.shape_cast %69 : vector<1x8x64xf32> to vector<8x64xf32>
    %c8_47 = arith.constant 8 : index
    %c0_48 = arith.constant 0 : index
    %c0_49 = arith.constant 0 : index
    %71 = vector.load %arg3[%c8_47, %c0_48, %c0_49] : memref<9x64x128xf32, #tpu.memory_space<vmem>>, vector<1x64x128xf32>
    %72 = vector.shape_cast %71 : vector<1x64x128xf32> to vector<64x128xf32>
    %cst_50 = arith.constant dense<0.000000e+00> : vector<8x128xf32>
    %73 = tpu.matmul %70, %72, %cst_50 {dimension_numbers = #tpu.dot_dimension_numbers<[1], [0], [0], [1], [0, 0, 1, 1], [], []>} : vector<8x64xf32>, vector<64x128xf32>, vector<8x128xf32> -> vector<8x128xf32>
    %74 = arith.addf %66, %73 : vector<8x128xf32>
    %c0_51 = arith.constant 0 : index
    %c0_52 = arith.constant 0 : index
    %c0_53 = arith.constant 0 : index
    %75 = vector.load %arg4[%c0_51, %c0_52, %c0_53] : memref<1x8x128xf32, #tpu.memory_space<vmem>>, vector<1x8x128xf32>
    %76 = vector.shape_cast %75 : vector<1x8x128xf32> to vector<8x128xf32>
    %77 = vector.shape_cast %74 : vector<8x128xf32> to vector<1x8x128xf32>
    tpu.vector_store %arg4[%c0_51, %c0_52, %c0_53], %77 {strides = array<i32>} : memref<1x8x128xf32, #tpu.memory_space<vmem>>, vector<1x8x128xf32>,
    return
  }
  func.func @transform_0(%arg0: i32, %arg1: i32) -> (i32, i32, i32) {
    %c0_i32 = arith.constant 0 : i32
    %c0_i32_0 = arith.constant 0 : i32
    %c0_i32_1 = arith.constant 0 : i32
    return %arg0, %c0_i32, %c0_i32_0 : i32, i32, i32
  }
  func.func @transform_1(%arg0: i32, %arg1: i32) -> (i32, i32, i32) {
    %c0_i32 = arith.constant 0 : i32
    %c0_i32_0 = arith.constant 0 : i32
    %c0_i32_1 = arith.constant 0 : i32
    %c0_i32_2 = arith.constant 0 : i32
    return %c0_i32, %c0_i32_0, %c0_i32_1 : i32, i32, i32
  }
  func.func @transform_2(%arg0: i32, %arg1: i32) -> (i32, i32, i32) {
    %c0_i32 = arith.constant 0 : i32
    %c0_i32_0 = arith.constant 0 : i32
    return %arg0, %arg1, %c0_i32 : i32, i32, i32
  }
}

</mosaic_0001>

<llo_original>
// kernel: tpu_custom_call.1
$region0: #{tpu_custom_call.1}
  #allocation0 [shape = 'u32[]', space=smem, size = 0x4, offset = 0x4, fixed_abs, tag = 'smem constant byte address 0x4 - core index']
  #allocation1 [shape = 'u32[144,128]{1,0:T(1,128)}', space=vmem, size = 0x12000, scoped, tag = 'internal scratch']
  %s0 = inlined_call_operand.vmem [shape: f32[2,18,72], index: 0, kind: input, shape index: {}]
  %s1 = inlined_call_operand.hbm [shape: f32[9,64,128], index: 1, kind: input, shape index: {}]
  %s2 = inlined_call_operand.hbm [shape: f32[2,16,128], index: 2, kind: output, shape index: {}]
  %s3 = sld [smem:[#allocation0]]
  $region45: #{tpu_custom_call.1} parent=0
    _
  %s5 = ssub.s32 1, %s3
  %s6 = scalar_select 0, %s5, %s3
  $region1: #{tpu_custom_call.1} parent=0
    #allocation2 [shape = 'u8[294912]{0}', space=vmem, size = 0x48000, scoped, tag = 'input window, operand 1, single buffered']
    #allocation3 [shape = 's32[2]{0}', space=sflag, size = 0x8, scoped, tag = 'scoped memory for tpu_custom_call.1']
    #allocation4 [shape = 's32[2]{0}', space=sflag, size = 0x8, scoped, tag = 'scoped memory for tpu_custom_call.1']
    #allocation5 [shape = 'u8[8192]{0}', space=vmem, size = 0x2000, scoped, tag = 'output window, operand 0']
    %7 = vsyncpa [#allocation3], 0
    %8 = vsyncpa [#allocation4], 0
    %s9 = scalar_lea.sflag [#allocation4], 1
    %10 = vsyncpa %s9, 0
    loop: start=0, step=1, limit=6
    $region2: #{tpu_custom_call.1} parent=1 // loop_pre_header
      _
    $region3: #{tpu_custom_call.1} parent=1 // loop_header
      %s12 = sphi 0, %s16
      %p13 = scmp.ge.s32.totalorder %s12, 6
      %s19 = sphi 0, %s31
      %s20 = sphi 0, %s27
      %s21 = sphi 0, %s19
      %s22 = sphi 0, %s20
      %s23 = sphi 0, %s21
      %s24 = sphi 0, %s22
      %s34 = sphi 0, %s36
      %s37 = sphi 0, %s34
      %s38 = sphi 0, %s37
      %s54 = sphi 0, %s38
      %s58 = sphi 0, %s58
      %s60 = sphi 0, %s58
      %s61 = sphi 0, %s60
      %s75 = sphi 0, %s61
      %s83 = sphi 0, %s85
      %s86 = sphi 0, %s83
      %s87 = sphi 0, %s86
      %s103 = sphi 0, %s87
    $region4: #{tpu_custom_call.1} parent=1 // loop_header_branch
      %15 = sbr.rel (%p13) target = $region8
    $region5: #{tpu_custom_call.1} parent=1 // loop_body
      %s17 = ssub.s32 %s12, 1
      %s18 = ssub.s32 %s12, 2
      %s25 = sadd.s32 1, %s20
      %p26 = scmp.ge.s32.totalorder %s25, 2
      %s27 = scalar_select %p26, 0, %s25
      %s28 = sadd.s32 1, %s19
      %s29 = scalar_select %p26, %s28, %s19
      %p30 = scmp.ge.s32.totalorder %s29, 2
      %s31 = scalar_select %p30, 0, %s29
      %s32 = ssub.s32 %s19, %s31
      %p33 = scmp.eq.s32.totalorder %s32, 0
      %s35 = sadd.s32 %s34, 1
      %s36 = scalar_select %p33, %s34, %s35
      %p39 = pneg %p33
      %p40 = scmp.eq.s32.totalorder %s12, 3
      %p41 = por %p39, %p40
      %p42 = scmp.ne.s32.totalorder %s34, %s37
      %p43 = scmp.eq.s32.totalorder %s12, 0
      %p44 = por %p42, %p43
      %p45 = scmp.ne.s32.totalorder %s34, %s37
      %p46 = scmp.eq.s32.totalorder %s17, 3
      %p47 = por %p45, %p46
      %p48 = scmp.ne.s32.totalorder %s37, %s38
      %p49 = scmp.eq.s32.totalorder %s17, 0
      %p50 = por %p48, %p49
      %p51 = scmp.ne.s32.totalorder %s37, %s38
      %p52 = scmp.eq.s32.totalorder %s18, 3
      %p53 = por %p51, %p52
      %p55 = scmp.ne.s32.totalorder %s38, %s54
      %p56 = scmp.eq.s32.totalorder %s18, 0
      %p57 = por %p55, %p56
      %s59 = sadd.s32 %s58, 1
      %p62 = scmp.eq.s32.totalorder %s12, 3
      %p63 = scmp.ne.s32.totalorder %s58, %s60
      %p64 = scmp.eq.s32.totalorder %s12, 0
      %p65 = por %p63, %p64
      %p66 = scmp.ne.s32.totalorder %s58, %s60
      %p67 = scmp.eq.s32.totalorder %s17, 3
      %p68 = por %p66, %p67
      %p69 = scmp.ne.s32.totalorder %s60, %s61
      %p70 = scmp.eq.s32.totalorder %s17, 0
      %p71 = por %p69, %p70
      %p72 = scmp.ne.s32.totalorder %s60, %s61
      %p73 = scmp.eq.s32.totalorder %s18, 3
      %p74 = por %p72, %p73
      %p76 = scmp.ne.s32.totalorder %s61, %s75
      %p77 = scmp.eq.s32.totalorder %s18, 0
      %p78 = por %p76, %p77
      %s79 = ssub.s32 %s19, %s31
      %s80 = ssub.s32 %s20, %s27
      %s81 = sor.u32 %s79, %s80
      %p82 = scmp.eq.s32.totalorder %s81, 0
      %s84 = sadd.s32 %s83, 1
      %s85 = scalar_select %p82, %s83, %s84
      %p88 = pneg %p82
      %p89 = scmp.eq.s32.totalorder %s12, 3
      %p90 = por %p88, %p89
      %p91 = scmp.ne.s32.totalorder %s83, %s86
      %p92 = scmp.eq.s32.totalorder %s12, 0
      %p93 = por %p91, %p92
      %p94 = scmp.ne.s32.totalorder %s83, %s86
      %p95 = scmp.eq.s32.totalorder %s17, 3
      %p96 = por %p94, %p95
      %p97 = scmp.ne.s32.totalorder %s86, %s87
      %p98 = scmp.eq.s32.totalorder %s17, 0
      %p99 = por %p97, %p98
      %p100 = scmp.ne.s32.totalorder %s86, %s87
      %p101 = scmp.eq.s32.totalorder %s18, 3
      %p102 = por %p100, %p101
      %p104 = scmp.ne.s32.totalorder %s87, %s103
      %p105 = scmp.eq.s32.totalorder %s18, 0
      %p106 = por %p104, %p105
      %p107 = scmp.le.s32.totalorder 1, %s12
      %p108 = scmp.lt.s32.totalorder %s12, 5
      %p109 = pnand %p107, %p108
      %p110 = pneg %p109
      // Predicated region
      $region9: #{tpu_custom_call.1} parent=5 // pred_check
        _
      $region10: #{tpu_custom_call.1} parent=5 // pred_check_branch
        %112 = sbr.rel (%p109) target = $region12
      $region11: #{tpu_custom_call.1} parent=5 // pred_region
        %s113 = ssub.s32 %s12, 1
        // Predicated region
        $region13: #{tpu_custom_call.1} parent=11 // pred_check
          %p114 = pneg %p71
        $region14: #{tpu_custom_call.1} parent=11 // pred_check_branch
          %116 = sbr.rel (%p114) target = $region16
        $region15: #{tpu_custom_call.1} parent=11 // pred_region
          %s118 = ssub.s32 9216, 9216
          %119 = vsyncadd [#allocation3], %s118
          %s120 = sshll.u32 [#allocation2], 4
          %s121 = int_to_ptr.vmem [resolvable:$true] %s120
          %126 = dma.hbm_to_vmem [thread:$0]  %s1, 9216, %s121, [#allocation3], 128, 128, 8
        $region16: #{tpu_custom_call.1} parent=11 // pred_fallthru
          _
      $region12: #{tpu_custom_call.1} parent=5 // pred_fallthru
        _
      %p127 = scmp.lt.s32.totalorder %s12, 4
      // Predicated region
      $region17: #{tpu_custom_call.1} parent=5 // pred_check
        %p128 = pneg %p127
      $region18: #{tpu_custom_call.1} parent=5 // pred_check_branch
        %130 = sbr.rel (%p128) target = $region20
      $region19: #{tpu_custom_call.1} parent=5 // pred_region
        // Predicated region
        $region21: #{tpu_custom_call.1} parent=19 // pred_check
          %p131 = pneg %p44
        $region22: #{tpu_custom_call.1} parent=19 // pred_check_branch
          %133 = sbr.rel (%p131) target = $region24
        $region23: #{tpu_custom_call.1} parent=19 // pred_region
          %p134 = scmp.lt.s32.totalorder %s19, 1
          %s135 = scalar_select %p134, %s19, 1
          %s136 = smul.addr %s135, 3
          %s137 = smul.addr %s136, 8
          %s138 = scalar_lea.vmem %s0, %s137
        $region24: #{tpu_custom_call.1} parent=19 // pred_fallthru
          _
      $region20: #{tpu_custom_call.1} parent=5 // pred_fallthru
        _
      %p139 = scmp.le.s32.totalorder 1, %s12
      %p140 = scmp.lt.s32.totalorder %s12, 5
      %p141 = pnand %p139, %p140
      %p142 = pneg %p141
      // Predicated region
      $region25: #{tpu_custom_call.1} parent=5 // pred_check
        _
      $region26: #{tpu_custom_call.1} parent=5 // pred_check_branch
        %144 = sbr.rel (%p141) target = $region28
      $region27: #{tpu_custom_call.1} parent=5 // pred_region
        %s145 = ssub.s32 %s12, 1
        // Predicated region
        $region29: #{tpu_custom_call.1} parent=27 // pred_check
          %p146 = pneg %p71
        $region30: #{tpu_custom_call.1} parent=27 // pred_check_branch
          %148 = sbr.rel (%p146) target = $region32
        $region31: #{tpu_custom_call.1} parent=27 // pred_region
          %149 = dma.done [#allocation3], 9216
        $region32: #{tpu_custom_call.1} parent=27 // pred_fallthru
          _
        %p150 = scmp.lt.s32.totalorder %s21, 1
        %s151 = scalar_select %p150, %s21, 1
        %s152 = smul.addr %s151, 3
        %s153 = smul.addr %s152, 8
        %s154 = scalar_lea.vmem %s0, %s153
        %p155 = pneg %p50
        %p156 = pneg %p47
        %p157 = pneg %p71
        %p158 = pneg %p68
        %p159 = pneg %p99
        %p160 = pneg %p96
        %s161 = sand.u32 %s86, 1
        %s162 = scalar_lea.sflag [#allocation4], %s161
        %s163 = sand.u32 %s86, 1
        %s164 = smul.addr %s163, 8
        %s165 = scalar_lea.vmem [#allocation5], %s164
        %p166 = scmp.lt.s32.totalorder %s21, 1
        %s167 = scalar_select %p166, %s21, 1
        %s168 = smul.addr %s167, 3
        %s169 = smul.addr %s168, 8
        %s170 = scalar_lea.vmem %s0, %s169
        %s171 = smul.u32 %s22, 8
        %s172 = scalar_lea.vmem %s170, %s171
        %v173 = vld [vmem:[%s172] sm:$0xff]
        %v174 = vld [vmem:[#allocation2] sm:$0xff]
        %v175 = vld [vmem:[#allocation2 + $0x8] sm:$0xff]
        %v176 = vld [vmem:[#allocation2 + $0x10] sm:$0xff]
        %v177 = vld [vmem:[#allocation2 + $0x18] sm:$0xff]
        %v178 = vld [vmem:[#allocation2 + $0x20] sm:$0xff]
        %v179 = vld [vmem:[#allocation2 + $0x28] sm:$0xff]
        %v180 = vld [vmem:[#allocation2 + $0x30] sm:$0xff]
        %v181 = vld [vmem:[#allocation2 + $0x38] sm:$0xff]
        %s182 = scalar_lea.vmem [#allocation2], 64
        %v183 = vld [vmem:[%s182] sm:$0xff]
        %v184 = vld [vmem:[%s182 + $0x8] sm:$0xff]
        %v185 = vld [vmem:[%s182 + $0x10] sm:$0xff]
        %v186 = vld [vmem:[%s182 + $0x18] sm:$0xff]
        %v187 = vld [vmem:[%s182 + $0x20] sm:$0xff]
        %v188 = vld [vmem:[%s182 + $0x28] sm:$0xff]
        %v189 = vld [vmem:[%s182 + $0x30] sm:$0xff]
        %v190 = vld [vmem:[%s182 + $0x38] sm:$0xff]
        %192 = vrot.lane.b32.xlu0 %v173, 124
        %v193 = vpop.permute.xlu0 %192
        %vm194 = vcmask 523264
        %v195 = vsel %vm194, %v193, 0
        %197 = vmatprep.subr.mxu0 0.0
        %198 = vmatpush1.msra.mxu0 0.0
        %199 = vmatprep.subr.mxu0 0.0
        %200 = vmatpush1.msra.mxu0 0.0
        %201 = vmatprep.subr.mxu0 0.0
        %202 = vmatpush1.msra.mxu0 0.0
        %203 = vmatprep.subr.mxu0 0.0
        %204 = vmatpush1.msra.mxu0 0.0
        %205 = vmatprep.subr.mxu0 0.0
        %206 = vmatpush1.msra.mxu0 0.0
        %207 = vmatprep.subr.mxu0 0.0
        %208 = vmatpush1.msra.mxu0 0.0
        %209 = vmatprep.subr.mxu0 0.0
        %210 = vmatpush1.msra.mxu0 0.0
        %211 = vmatprep.subr.mxu0 0.0
        %212 = vmatpush1.msra.mxu0 0.0
        %213 = vmatprep.subr.mxu0 0.0
        %214 = vmatpush1.msra.mxu0 %v190
        %215 = vmatprep.subr.mxu0 0.0
        %216 = vmatpush1.msra.mxu0 %v189
        %217 = vmatprep.subr.mxu0 0.0
        %218 = vmatpush1.msra.mxu0 %v188
        %219 = vmatprep.subr.mxu0 0.0
        %220 = vmatpush1.msra.mxu0 %v187
        %221 = vmatprep.subr.mxu0 0.0
        %222 = vmatpush1.msra.mxu0 %v186
        %223 = vmatprep.subr.mxu0 0.0
        %224 = vmatpush1.msra.mxu0 %v185
        %225 = vmatprep.subr.mxu0 0.0
        %226 = vmatpush1.msra.mxu0 %v184
        %227 = vmatprep.subr.mxu0 0.0
        %228 = vmatpush1.msra.mxu0 %v183
        %229 = vmatprep.subr.mxu0 0.0
        %230 = vmatpush2.msra.mxu0 0.0
        %231 = vmatprep.subr.mxu0 0.0
        %232 = vmatpush2.msra.mxu0 0.0
        %233 = vmatprep.subr.mxu0 0.0
        %234 = vmatpush2.msra.mxu0 0.0
        %235 = vmatprep.subr.mxu0 0.0
        %236 = vmatpush2.msra.mxu0 0.0
        %237 = vmatprep.subr.mxu0 0.0
        %238 = vmatpush2.msra.mxu0 0.0
        %239 = vmatprep.subr.mxu0 0.0
        %240 = vmatpush2.msra.mxu0 0.0
        %241 = vmatprep.subr.mxu0 0.0
        %242 = vmatpush2.msra.mxu0 0.0
        %243 = vmatprep.subr.mxu0 0.0
        %244 = vmatpush2.msra.mxu0 0.0
        %245 = vmatprep.subr.mxu0 0.0
        %246 = vmatpush2.msra.mxu0 0.0
        %247 = vmatprep.subr.mxu0 0.0
        %248 = vmatpush2.msra.mxu0 0.0
        %249 = vmatprep.subr.mxu0 0.0
        %250 = vmatpush2.msra.mxu0 0.0
        %251 = vmatprep.subr.mxu0 0.0
        %252 = vmatpush2.msra.mxu0 0.0
        %253 = vmatprep.subr.mxu0 0.0
        %254 = vmatpush2.msra.mxu0 0.0
        %255 = vmatprep.subr.mxu0 0.0
        %256 = vmatpush2.msra.mxu0 0.0
        %257 = vmatprep.subr.mxu0 0.0
        %258 = vmatpush2.msra.mxu0 0.0
        %259 = vmatprep.subr.mxu0 0.0
        %260 = vmatpush2.msra.mxu0 0.0
        %261 = vmatprep.mubr.f32.mxu0 0.0
        %262 = vmatmul.mubr.f32.gmra.mxu0 %v195
        %v263 = vpop.f32.mrf.mxu0
        %v264 = vadd.f32 0.0, %v263
        %v265 = vpop.f32.mrf.mxu0
        %266 = vdwg.mxu0
        %v267 = vsel %vm194, %v173, 0
        %269 = vmatprep.subr.mxu0 0.0
        %270 = vmatpush1.msra.mxu0 0.0
        %271 = vmatprep.subr.mxu0 0.0
        %272 = vmatpush1.msra.mxu0 0.0
        %273 = vmatprep.subr.mxu0 0.0
        %274 = vmatpush1.msra.mxu0 0.0
        %275 = vmatprep.subr.mxu0 0.0
        %276 = vmatpush1.msra.mxu0 0.0
        %277 = vmatprep.subr.mxu0 0.0
        %278 = vmatpush1.msra.mxu0 0.0
        %279 = vmatprep.subr.mxu0 0.0
        %280 = vmatpush1.msra.mxu0 0.0
        %281 = vmatprep.subr.mxu0 0.0
        %282 = vmatpush1.msra.mxu0 0.0
        %283 = vmatprep.subr.mxu0 0.0
        %284 = vmatpush1.msra.mxu0 0.0
        %285 = vmatprep.subr.mxu0 0.0
        %286 = vmatpush1.msra.mxu0 %v181
        %287 = vmatprep.subr.mxu0 0.0
        %288 = vmatpush1.msra.mxu0 %v180
        %289 = vmatprep.subr.mxu0 0.0
        %290 = vmatpush1.msra.mxu0 %v179
        %291 = vmatprep.subr.mxu0 0.0
        %292 = vmatpush1.msra.mxu0 %v178
        %293 = vmatprep.subr.mxu0 0.0
        %294 = vmatpush1.msra.mxu0 %v177
        %295 = vmatprep.subr.mxu0 0.0
        %296 = vmatpush1.msra.mxu0 %v176
        %297 = vmatprep.subr.mxu0 0.0
        %298 = vmatpush1.msra.mxu0 %v175
        %299 = vmatprep.subr.mxu0 0.0
        %300 = vmatpush1.msra.mxu0 %v174
        %301 = vmatprep.subr.mxu0 0.0
        %302 = vmatpush2.msra.mxu0 0.0
        %303 = vmatprep.subr.mxu0 0.0
        %304 = vmatpush2.msra.mxu0 0.0
        %305 = vmatprep.subr.mxu0 0.0
        %306 = vmatpush2.msra.mxu0 0.0
        %307 = vmatprep.subr.mxu0 0.0
        %308 = vmatpush2.msra.mxu0 0.0
        %309 = vmatprep.subr.mxu0 0.0
        %310 = vmatpush2.msra.mxu0 0.0
        %311 = vmatprep.subr.mxu0 0.0
        %312 = vmatpush2.msra.mxu0 0.0
        %313 = vmatprep.subr.mxu0 0.0
        %314 = vmatpush2.msra.mxu0 0.0
        %315 = vmatprep.subr.mxu0 0.0
        %316 = vmatpush2.msra.mxu0 0.0
        %317 = vmatprep.subr.mxu0 0.0
        %318 = vmatpush2.msra.mxu0 0.0
        %319 = vmatprep.subr.mxu0 0.0
        %320 = vmatpush2.msra.mxu0 0.0
        %321 = vmatprep.subr.mxu0 0.0
        %322 = vmatpush2.msra.mxu0 0.0
        %323 = vmatprep.subr.mxu0 0.0
        %324 = vmatpush2.msra.mxu0 0.0
        %325 = vmatprep.subr.mxu0 0.0
        %326 = vmatpush2.msra.mxu0 0.0
        %327 = vmatprep.subr.mxu0 0.0
        %328 = vmatpush2.msra.mxu0 0.0
        %329 = vmatprep.subr.mxu0 0.0
        %330 = vmatpush2.msra.mxu0 0.0
        %331 = vmatprep.subr.mxu0 0.0
        %332 = vmatpush2.msra.mxu0 0.0
        %333 = vmatprep.mubr.f32.mxu0 0.0
        %334 = vmatmul.mubr.f32.gmra.mxu0 %v267
        %v335 = vpop.f32.mrf.mxu0
        %v336 = vadd.f32 %v264, %v335
        %v337 = vpop.f32.mrf.mxu0
        %338 = vdwg.mxu0
        %s339 = scalar_lea.vmem [#allocation2], 128
        %v340 = vld [vmem:[%s339] sm:$0xff]
        %v341 = vld [vmem:[%s339 + $0x8] sm:$0xff]
        %v342 = vld [vmem:[%s339 + $0x10] sm:$0xff]
        %v343 = vld [vmem:[%s339 + $0x18] sm:$0xff]
        %v344 = vld [vmem:[%s339 + $0x20] sm:$0xff]
        %v345 = vld [vmem:[%s339 + $0x28] sm:$0xff]
        %v346 = vld [vmem:[%s339 + $0x30] sm:$0xff]
        %v347 = vld [vmem:[%s339 + $0x38] sm:$0xff]
        %348 = vrot.lane.b32.xlu0 %v173, 120
        %v349 = vpop.permute.xlu0 %348
        %v350 = vsel %vm194, %v349, 0
        %352 = vmatprep.subr.mxu0 0.0
        %353 = vmatpush1.msra.mxu0 0.0
        %354 = vmatprep.subr.mxu0 0.0
        %355 = vmatpush1.msra.mxu0 0.0
        %356 = vmatprep.subr.mxu0 0.0
        %357 = vmatpush1.msra.mxu0 0.0
        %358 = vmatprep.subr.mxu0 0.0
        %359 = vmatpush1.msra.mxu0 0.0
        %360 = vmatprep.subr.mxu0 0.0
        %361 = vmatpush1.msra.mxu0 0.0
        %362 = vmatprep.subr.mxu0 0.0
        %363 = vmatpush1.msra.mxu0 0.0
        %364 = vmatprep.subr.mxu0 0.0
        %365 = vmatpush1.msra.mxu0 0.0
        %366 = vmatprep.subr.mxu0 0.0
        %367 = vmatpush1.msra.mxu0 0.0
        %368 = vmatprep.subr.mxu0 0.0
        %369 = vmatpush1.msra.mxu0 %v347
        %370 = vmatprep.subr.mxu0 0.0
        %371 = vmatpush1.msra.mxu0 %v346
        %372 = vmatprep.subr.mxu0 0.0
        %373 = vmatpush1.msra.mxu0 %v345
        %374 = vmatprep.subr.mxu0 0.0
        %375 = vmatpush1.msra.mxu0 %v344
        %376 = vmatprep.subr.mxu0 0.0
        %377 = vmatpush1.msra.mxu0 %v343
        %378 = vmatprep.subr.mxu0 0.0
        %379 = vmatpush1.msra.mxu0 %v342
        %380 = vmatprep.subr.mxu0 0.0
        %381 = vmatpush1.msra.mxu0 %v341
        %382 = vmatprep.subr.mxu0 0.0
        %383 = vmatpush1.msra.mxu0 %v340
        %384 = vmatprep.subr.mxu0 0.0
        %385 = vmatpush2.msra.mxu0 0.0
        %386 = vmatprep.subr.mxu0 0.0
        %387 = vmatpush2.msra.mxu0 0.0
        %388 = vmatprep.subr.mxu0 0.0
        %389 = vmatpush2.msra.mxu0 0.0
        %390 = vmatprep.subr.mxu0 0.0
        %391 = vmatpush2.msra.mxu0 0.0
        %392 = vmatprep.subr.mxu0 0.0
        %393 = vmatpush2.msra.mxu0 0.0
        %394 = vmatprep.subr.mxu0 0.0
        %395 = vmatpush2.msra.mxu0 0.0
        %396 = vmatprep.subr.mxu0 0.0
        %397 = vmatpush2.msra.mxu0 0.0
        %398 = vmatprep.subr.mxu0 0.0
        %399 = vmatpush2.msra.mxu0 0.0
        %400 = vmatprep.subr.mxu0 0.0
        %401 = vmatpush2.msra.mxu0 0.0
        %402 = vmatprep.subr.mxu0 0.0
        %403 = vmatpush2.msra.mxu0 0.0
        %404 = vmatprep.subr.mxu0 0.0
        %405 = vmatpush2.msra.mxu0 0.0
        %406 = vmatprep.subr.mxu0 0.0
        %407 = vmatpush2.msra.mxu0 0.0
        %408 = vmatprep.subr.mxu0 0.0
        %409 = vmatpush2.msra.mxu0 0.0
        %410 = vmatprep.subr.mxu0 0.0
        %411 = vmatpush2.msra.mxu0 0.0
        %412 = vmatprep.subr.mxu0 0.0
        %413 = vmatpush2.msra.mxu0 0.0
        %414 = vmatprep.subr.mxu0 0.0
        %415 = vmatpush2.msra.mxu0 0.0
        %416 = vmatprep.mubr.f32.mxu0 0.0
        %417 = vmatmul.mubr.f32.gmra.mxu0 %v350
        %v418 = vpop.f32.mrf.mxu0
        %v419 = vadd.f32 0.0, %v418
        %v420 = vpop.f32.mrf.mxu0
        %421 = vdwg.mxu0
        %v422 = vadd.f32 %v336, %v419
        %s423 = sadd.s32 %s171, 1
        %s424 = scalar_lea.vmem %s170, %s423
        %v425 = vld [vmem:[%s424] sm:$0xff]
        %s426 = scalar_lea.vmem [#allocation2], 192
        %v427 = vld [vmem:[%s426] sm:$0xff]
        %v428 = vld [vmem:[%s426 + $0x8] sm:$0xff]
        %v429 = vld [vmem:[%s426 + $0x10] sm:$0xff]
        %v430 = vld [vmem:[%s426 + $0x18] sm:$0xff]
        %v431 = vld [vmem:[%s426 + $0x20] sm:$0xff]
        %v432 = vld [vmem:[%s426 + $0x28] sm:$0xff]
        %v433 = vld [vmem:[%s426 + $0x30] sm:$0xff]
        %v434 = vld [vmem:[%s426 + $0x38] sm:$0xff]
        %v436 = vsel %vm194, %v425, 0
        %438 = vmatprep.subr.mxu0 0.0
        %439 = vmatpush1.msra.mxu0 0.0
        %440 = vmatprep.subr.mxu0 0.0
        %441 = vmatpush1.msra.mxu0 0.0
        %442 = vmatprep.subr.mxu0 0.0
        %443 = vmatpush1.msra.mxu0 0.0
        %444 = vmatprep.subr.mxu0 0.0
        %445 = vmatpush1.msra.mxu0 0.0
        %446 = vmatprep.subr.mxu0 0.0
        %447 = vmatpush1.msra.mxu0 0.0
        %448 = vmatprep.subr.mxu0 0.0
        %449 = vmatpush1.msra.mxu0 0.0
        %450 = vmatprep.subr.mxu0 0.0
        %451 = vmatpush1.msra.mxu0 0.0
        %452 = vmatprep.subr.mxu0 0.0
        %453 = vmatpush1.msra.mxu0 0.0
        %454 = vmatprep.subr.mxu0 0.0
        %455 = vmatpush1.msra.mxu0 %v434
        %456 = vmatprep.subr.mxu0 0.0
        %457 = vmatpush1.msra.mxu0 %v433
        %458 = vmatprep.subr.mxu0 0.0
        %459 = vmatpush1.msra.mxu0 %v432
        %460 = vmatprep.subr.mxu0 0.0
        %461 = vmatpush1.msra.mxu0 %v431
        %462 = vmatprep.subr.mxu0 0.0
        %463 = vmatpush1.msra.mxu0 %v430
        %464 = vmatprep.subr.mxu0 0.0
        %465 = vmatpush1.msra.mxu0 %v429
        %466 = vmatprep.subr.mxu0 0.0
        %467 = vmatpush1.msra.mxu0 %v428
        %468 = vmatprep.subr.mxu0 0.0
        %469 = vmatpush1.msra.mxu0 %v427
        %470 = vmatprep.subr.mxu0 0.0
        %471 = vmatpush2.msra.mxu0 0.0
        %472 = vmatprep.subr.mxu0 0.0
        %473 = vmatpush2.msra.mxu0 0.0
        %474 = vmatprep.subr.mxu0 0.0
        %475 = vmatpush2.msra.mxu0 0.0
        %476 = vmatprep.subr.mxu0 0.0
        %477 = vmatpush2.msra.mxu0 0.0
        %478 = vmatprep.subr.mxu0 0.0
        %479 = vmatpush2.msra.mxu0 0.0
        %480 = vmatprep.subr.mxu0 0.0
        %481 = vmatpush2.msra.mxu0 0.0
        %482 = vmatprep.subr.mxu0 0.0
        %483 = vmatpush2.msra.mxu0 0.0
        %484 = vmatprep.subr.mxu0 0.0
        %485 = vmatpush2.msra.mxu0 0.0
        %486 = vmatprep.subr.mxu0 0.0
        %487 = vmatpush2.msra.mxu0 0.0
        %488 = vmatprep.subr.mxu0 0.0
        %489 = vmatpush2.msra.mxu0 0.0
        %490 = vmatprep.subr.mxu0 0.0
        %491 = vmatpush2.msra.mxu0 0.0
        %492 = vmatprep.subr.mxu0 0.0
        %493 = vmatpush2.msra.mxu0 0.0
        %494 = vmatprep.subr.mxu0 0.0
        %495 = vmatpush2.msra.mxu0 0.0
        %496 = vmatprep.subr.mxu0 0.0
        %497 = vmatpush2.msra.mxu0 0.0
        %498 = vmatprep.subr.mxu0 0.0
        %499 = vmatpush2.msra.mxu0 0.0
        %500 = vmatprep.subr.mxu0 0.0
        %501 = vmatpush2.msra.mxu0 0.0
        %502 = vmatprep.mubr.f32.mxu0 0.0
        %503 = vmatmul.mubr.f32.gmra.mxu0 %v436
        %v504 = vpop.f32.mrf.mxu0
        %v505 = vadd.f32 0.0, %v504
        %v506 = vpop.f32.mrf.mxu0
        %507 = vdwg.mxu0
        %v508 = vadd.f32 %v422, %v505
        %s509 = scalar_lea.vmem [#allocation2], 256
        %v510 = vld [vmem:[%s509] sm:$0xff]
        %v511 = vld [vmem:[%s509 + $0x8] sm:$0xff]
        %v512 = vld [vmem:[%s509 + $0x10] sm:$0xff]
        %v513 = vld [vmem:[%s509 + $0x18] sm:$0xff]
        %v514 = vld [vmem:[%s509 + $0x20] sm:$0xff]
        %v515 = vld [vmem:[%s509 + $0x28] sm:$0xff]
        %v516 = vld [vmem:[%s509 + $0x30] sm:$0xff]
        %v517 = vld [vmem:[%s509 + $0x38] sm:$0xff]
        %518 = vrot.lane.b32.xlu0 %v425, 124
        %v519 = vpop.permute.xlu0 %518
        %v520 = vsel %vm194, %v519, 0
        %522 = vmatprep.subr.mxu0 0.0
        %523 = vmatpush1.msra.mxu0 0.0
        %524 = vmatprep.subr.mxu0 0.0
        %525 = vmatpush1.msra.mxu0 0.0
        %526 = vmatprep.subr.mxu0 0.0
        %527 = vmatpush1.msra.mxu0 0.0
        %528 = vmatprep.subr.mxu0 0.0
        %529 = vmatpush1.msra.mxu0 0.0
        %530 = vmatprep.subr.mxu0 0.0
        %531 = vmatpush1.msra.mxu0 0.0
        %532 = vmatprep.subr.mxu0 0.0
        %533 = vmatpush1.msra.mxu0 0.0
        %534 = vmatprep.subr.mxu0 0.0
        %535 = vmatpush1.msra.mxu0 0.0
        %536 = vmatprep.subr.mxu0 0.0
        %537 = vmatpush1.msra.mxu0 0.0
        %538 = vmatprep.subr.mxu0 0.0
        %539 = vmatpush1.msra.mxu0 %v517
        %540 = vmatprep.subr.mxu0 0.0
        %541 = vmatpush1.msra.mxu0 %v516
        %542 = vmatprep.subr.mxu0 0.0
        %543 = vmatpush1.msra.mxu0 %v515
        %544 = vmatprep.subr.mxu0 0.0
        %545 = vmatpush1.msra.mxu0 %v514
        %546 = vmatprep.subr.mxu0 0.0
        %547 = vmatpush1.msra.mxu0 %v513
        %548 = vmatprep.subr.mxu0 0.0
        %549 = vmatpush1.msra.mxu0 %v512
        %550 = vmatprep.subr.mxu0 0.0
        %551 = vmatpush1.msra.mxu0 %v511
        %552 = vmatprep.subr.mxu0 0.0
        %553 = vmatpush1.msra.mxu0 %v510
        %554 = vmatprep.subr.mxu0 0.0
        %555 = vmatpush2.msra.mxu0 0.0
        %556 = vmatprep.subr.mxu0 0.0
        %557 = vmatpush2.msra.mxu0 0.0
        %558 = vmatprep.subr.mxu0 0.0
        %559 = vmatpush2.msra.mxu0 0.0
        %560 = vmatprep.subr.mxu0 0.0
        %561 = vmatpush2.msra.mxu0 0.0
        %562 = vmatprep.subr.mxu0 0.0
        %563 = vmatpush2.msra.mxu0 0.0
        %564 = vmatprep.subr.mxu0 0.0
        %565 = vmatpush2.msra.mxu0 0.0
        %566 = vmatprep.subr.mxu0 0.0
        %567 = vmatpush2.msra.mxu0 0.0
        %568 = vmatprep.subr.mxu0 0.0
        %569 = vmatpush2.msra.mxu0 0.0
        %570 = vmatprep.subr.mxu0 0.0
        %571 = vmatpush2.msra.mxu0 0.0
        %572 = vmatprep.subr.mxu0 0.0
        %573 = vmatpush2.msra.mxu0 0.0
        %574 = vmatprep.subr.mxu0 0.0
        %575 = vmatpush2.msra.mxu0 0.0
        %576 = vmatprep.subr.mxu0 0.0
        %577 = vmatpush2.msra.mxu0 0.0
        %578 = vmatprep.subr.mxu0 0.0
        %579 = vmatpush2.msra.mxu0 0.0
        %580 = vmatprep.subr.mxu0 0.0
        %581 = vmatpush2.msra.mxu0 0.0
        %582 = vmatprep.subr.mxu0 0.0
        %583 = vmatpush2.msra.mxu0 0.0
        %584 = vmatprep.subr.mxu0 0.0
        %585 = vmatpush2.msra.mxu0 0.0
        %586 = vmatprep.mubr.f32.mxu0 0.0
        %587 = vmatmul.mubr.f32.gmra.mxu0 %v520
        %v588 = vpop.f32.mrf.mxu0
        %v589 = vadd.f32 0.0, %v588
        %v590 = vpop.f32.mrf.mxu0
        %591 = vdwg.mxu0
        %v592 = vadd.f32 %v508, %v589
        %s593 = scalar_lea.vmem [#allocation2], 320
        %v594 = vld [vmem:[%s593] sm:$0xff]
        %v595 = vld [vmem:[%s593 + $0x8] sm:$0xff]
        %v596 = vld [vmem:[%s593 + $0x10] sm:$0xff]
        %v597 = vld [vmem:[%s593 + $0x18] sm:$0xff]
        %v598 = vld [vmem:[%s593 + $0x20] sm:$0xff]
        %v599 = vld [vmem:[%s593 + $0x28] sm:$0xff]
        %v600 = vld [vmem:[%s593 + $0x30] sm:$0xff]
        %v601 = vld [vmem:[%s593 + $0x38] sm:$0xff]
        %602 = vrot.lane.b32.xlu0 %v425, 120
        %v603 = vpop.permute.xlu0 %602
        %v604 = vsel %vm194, %v603, 0
        %606 = vmatprep.subr.mxu0 0.0
        %607 = vmatpush1.msra.mxu0 0.0
        %608 = vmatprep.subr.mxu0 0.0
        %609 = vmatpush1.msra.mxu0 0.0
        %610 = vmatprep.subr.mxu0 0.0
        %611 = vmatpush1.msra.mxu0 0.0
        %612 = vmatprep.subr.mxu0 0.0
        %613 = vmatpush1.msra.mxu0 0.0
        %614 = vmatprep.subr.mxu0 0.0
        %615 = vmatpush1.msra.mxu0 0.0
        %616 = vmatprep.subr.mxu0 0.0
        %617 = vmatpush1.msra.mxu0 0.0
        %618 = vmatprep.subr.mxu0 0.0
        %619 = vmatpush1.msra.mxu0 0.0
        %620 = vmatprep.subr.mxu0 0.0
        %621 = vmatpush1.msra.mxu0 0.0
        %622 = vmatprep.subr.mxu0 0.0
        %623 = vmatpush1.msra.mxu0 %v601
        %624 = vmatprep.subr.mxu0 0.0
        %625 = vmatpush1.msra.mxu0 %v600
        %626 = vmatprep.subr.mxu0 0.0
        %627 = vmatpush1.msra.mxu0 %v599
        %628 = vmatprep.subr.mxu0 0.0
        %629 = vmatpush1.msra.mxu0 %v598
        %630 = vmatprep.subr.mxu0 0.0
        %631 = vmatpush1.msra.mxu0 %v597
        %632 = vmatprep.subr.mxu0 0.0
        %633 = vmatpush1.msra.mxu0 %v596
        %634 = vmatprep.subr.mxu0 0.0
        %635 = vmatpush1.msra.mxu0 %v595
        %636 = vmatprep.subr.mxu0 0.0
        %637 = vmatpush1.msra.mxu0 %v594
        %638 = vmatprep.subr.mxu0 0.0
        %639 = vmatpush2.msra.mxu0 0.0
        %640 = vmatprep.subr.mxu0 0.0
        %641 = vmatpush2.msra.mxu0 0.0
        %642 = vmatprep.subr.mxu0 0.0
        %643 = vmatpush2.msra.mxu0 0.0
        %644 = vmatprep.subr.mxu0 0.0
        %645 = vmatpush2.msra.mxu0 0.0
        %646 = vmatprep.subr.mxu0 0.0
        %647 = vmatpush2.msra.mxu0 0.0
        %648 = vmatprep.subr.mxu0 0.0
        %649 = vmatpush2.msra.mxu0 0.0
        %650 = vmatprep.subr.mxu0 0.0
        %651 = vmatpush2.msra.mxu0 0.0
        %652 = vmatprep.subr.mxu0 0.0
        %653 = vmatpush2.msra.mxu0 0.0
        %654 = vmatprep.subr.mxu0 0.0
        %655 = vmatpush2.msra.mxu0 0.0
        %656 = vmatprep.subr.mxu0 0.0
        %657 = vmatpush2.msra.mxu0 0.0
        %658 = vmatprep.subr.mxu0 0.0
        %659 = vmatpush2.msra.mxu0 0.0
        %660 = vmatprep.subr.mxu0 0.0
        %661 = vmatpush2.msra.mxu0 0.0
        %662 = vmatprep.subr.mxu0 0.0
        %663 = vmatpush2.msra.mxu0 0.0
        %664 = vmatprep.subr.mxu0 0.0
        %665 = vmatpush2.msra.mxu0 0.0
        %666 = vmatprep.subr.mxu0 0.0
        %667 = vmatpush2.msra.mxu0 0.0
        %668 = vmatprep.subr.mxu0 0.0
        %669 = vmatpush2.msra.mxu0 0.0
        %670 = vmatprep.mubr.f32.mxu0 0.0
        %671 = vmatmul.mubr.f32.gmra.mxu0 %v604
        %v672 = vpop.f32.mrf.mxu0
        %v673 = vadd.f32 0.0, %v672
        %v674 = vpop.f32.mrf.mxu0
        %675 = vdwg.mxu0
        %v676 = vadd.f32 %v592, %v673
        %s677 = sadd.s32 %s171, 2
        %s678 = scalar_lea.vmem %s170, %s677
        %v679 = vld [vmem:[%s678] sm:$0xff]
        %s680 = scalar_lea.vmem [#allocation2], 384
        %v681 = vld [vmem:[%s680] sm:$0xff]
        %v682 = vld [vmem:[%s680 + $0x8] sm:$0xff]
        %v683 = vld [vmem:[%s680 + $0x10] sm:$0xff]
        %v684 = vld [vmem:[%s680 + $0x18] sm:$0xff]
        %v685 = vld [vmem:[%s680 + $0x20] sm:$0xff]
        %v686 = vld [vmem:[%s680 + $0x28] sm:$0xff]
        %v687 = vld [vmem:[%s680 + $0x30] sm:$0xff]
        %v688 = vld [vmem:[%s680 + $0x38] sm:$0xff]
        %v690 = vsel %vm194, %v679, 0
        %692 = vmatprep.subr.mxu0 0.0
        %693 = vmatpush1.msra.mxu0 0.0
        %694 = vmatprep.subr.mxu0 0.0
        %695 = vmatpush1.msra.mxu0 0.0
        %696 = vmatprep.subr.mxu0 0.0
        %697 = vmatpush1.msra.mxu0 0.0
        %698 = vmatprep.subr.mxu0 0.0
        %699 = vmatpush1.msra.mxu0 0.0
        %700 = vmatprep.subr.mxu0 0.0
        %701 = vmatpush1.msra.mxu0 0.0
        %702 = vmatprep.subr.mxu0 0.0
        %703 = vmatpush1.msra.mxu0 0.0
        %704 = vmatprep.subr.mxu0 0.0
        %705 = vmatpush1.msra.mxu0 0.0
        %706 = vmatprep.subr.mxu0 0.0
        %707 = vmatpush1.msra.mxu0 0.0
        %708 = vmatprep.subr.mxu0 0.0
        %709 = vmatpush1.msra.mxu0 %v688
        %710 = vmatprep.subr.mxu0 0.0
        %711 = vmatpush1.msra.mxu0 %v687
        %712 = vmatprep.subr.mxu0 0.0
        %713 = vmatpush1.msra.mxu0 %v686
        %714 = vmatprep.subr.mxu0 0.0
        %715 = vmatpush1.msra.mxu0 %v685
        %716 = vmatprep.subr.mxu0 0.0
        %717 = vmatpush1.msra.mxu0 %v684
        %718 = vmatprep.subr.mxu0 0.0
        %719 = vmatpush1.msra.mxu0 %v683
        %720 = vmatprep.subr.mxu0 0.0
        %721 = vmatpush1.msra.mxu0 %v682
        %722 = vmatprep.subr.mxu0 0.0
        %723 = vmatpush1.msra.mxu0 %v681
        %724 = vmatprep.subr.mxu0 0.0
        %725 = vmatpush2.msra.mxu0 0.0
        %726 = vmatprep.subr.mxu0 0.0
        %727 = vmatpush2.msra.mxu0 0.0
        %728 = vmatprep.subr.mxu0 0.0
        %729 = vmatpush2.msra.mxu0 0.0
        %730 = vmatprep.subr.mxu0 0.0
        %731 = vmatpush2.msra.mxu0 0.0
        %732 = vmatprep.subr.mxu0 0.0
        %733 = vmatpush2.msra.mxu0 0.0
        %734 = vmatprep.subr.mxu0 0.0
        %735 = vmatpush2.msra.mxu0 0.0
        %736 = vmatprep.subr.mxu0 0.0
        %737 = vmatpush2.msra.mxu0 0.0
        %738 = vmatprep.subr.mxu0 0.0
        %739 = vmatpush2.msra.mxu0 0.0
        %740 = vmatprep.subr.mxu0 0.0
        %741 = vmatpush2.msra.mxu0 0.0
        %742 = vmatprep.subr.mxu0 0.0
        %743 = vmatpush2.msra.mxu0 0.0
        %744 = vmatprep.subr.mxu0 0.0
        %745 = vmatpush2.msra.mxu0 0.0
        %746 = vmatprep.subr.mxu0 0.0
        %747 = vmatpush2.msra.mxu0 0.0
        %748 = vmatprep.subr.mxu0 0.0
        %749 = vmatpush2.msra.mxu0 0.0
        %750 = vmatprep.subr.mxu0 0.0
        %751 = vmatpush2.msra.mxu0 0.0
        %752 = vmatprep.subr.mxu0 0.0
        %753 = vmatpush2.msra.mxu0 0.0
        %754 = vmatprep.subr.mxu0 0.0
        %755 = vmatpush2.msra.mxu0 0.0
        %756 = vmatprep.mubr.f32.mxu0 0.0
        %757 = vmatmul.mubr.f32.gmra.mxu0 %v690
        %v758 = vpop.f32.mrf.mxu0
        %v759 = vadd.f32 0.0, %v758
        %v760 = vpop.f32.mrf.mxu0
        %761 = vdwg.mxu0
        %v762 = vadd.f32 %v676, %v759
        %s763 = scalar_lea.vmem [#allocation2], 448
        %v764 = vld [vmem:[%s763] sm:$0xff]
        %v765 = vld [vmem:[%s763 + $0x8] sm:$0xff]
        %v766 = vld [vmem:[%s763 + $0x10] sm:$0xff]
        %v767 = vld [vmem:[%s763 + $0x18] sm:$0xff]
        %v768 = vld [vmem:[%s763 + $0x20] sm:$0xff]
        %v769 = vld [vmem:[%s763 + $0x28] sm:$0xff]
        %v770 = vld [vmem:[%s763 + $0x30] sm:$0xff]
        %v771 = vld [vmem:[%s763 + $0x38] sm:$0xff]
        %772 = vrot.lane.b32.xlu0 %v679, 124
        %v773 = vpop.permute.xlu0 %772
        %v774 = vsel %vm194, %v773, 0
        %776 = vmatprep.subr.mxu0 0.0
        %777 = vmatpush1.msra.mxu0 0.0
        %778 = vmatprep.subr.mxu0 0.0
        %779 = vmatpush1.msra.mxu0 0.0
        %780 = vmatprep.subr.mxu0 0.0
        %781 = vmatpush1.msra.mxu0 0.0
        %782 = vmatprep.subr.mxu0 0.0
        %783 = vmatpush1.msra.mxu0 0.0
        %784 = vmatprep.subr.mxu0 0.0
        %785 = vmatpush1.msra.mxu0 0.0
        %786 = vmatprep.subr.mxu0 0.0
        %787 = vmatpush1.msra.mxu0 0.0
        %788 = vmatprep.subr.mxu0 0.0
        %789 = vmatpush1.msra.mxu0 0.0
        %790 = vmatprep.subr.mxu0 0.0
        %791 = vmatpush1.msra.mxu0 0.0
        %792 = vmatprep.subr.mxu0 0.0
        %793 = vmatpush1.msra.mxu0 %v771
        %794 = vmatprep.subr.mxu0 0.0
        %795 = vmatpush1.msra.mxu0 %v770
        %796 = vmatprep.subr.mxu0 0.0
        %797 = vmatpush1.msra.mxu0 %v769
        %798 = vmatprep.subr.mxu0 0.0
        %799 = vmatpush1.msra.mxu0 %v768
        %800 = vmatprep.subr.mxu0 0.0
        %801 = vmatpush1.msra.mxu0 %v767
        %802 = vmatprep.subr.mxu0 0.0
        %803 = vmatpush1.msra.mxu0 %v766
        %804 = vmatprep.subr.mxu0 0.0
        %805 = vmatpush1.msra.mxu0 %v765
        %806 = vmatprep.subr.mxu0 0.0
        %807 = vmatpush1.msra.mxu0 %v764
        %808 = vmatprep.subr.mxu0 0.0
        %809 = vmatpush2.msra.mxu0 0.0
        %810 = vmatprep.subr.mxu0 0.0
        %811 = vmatpush2.msra.mxu0 0.0
        %812 = vmatprep.subr.mxu0 0.0
        %813 = vmatpush2.msra.mxu0 0.0
        %814 = vmatprep.subr.mxu0 0.0
        %815 = vmatpush2.msra.mxu0 0.0
        %816 = vmatprep.subr.mxu0 0.0
        %817 = vmatpush2.msra.mxu0 0.0
        %818 = vmatprep.subr.mxu0 0.0
        %819 = vmatpush2.msra.mxu0 0.0
        %820 = vmatprep.subr.mxu0 0.0
        %821 = vmatpush2.msra.mxu0 0.0
        %822 = vmatprep.subr.mxu0 0.0
        %823 = vmatpush2.msra.mxu0 0.0
        %824 = vmatprep.subr.mxu0 0.0
        %825 = vmatpush2.msra.mxu0 0.0
        %826 = vmatprep.subr.mxu0 0.0
        %827 = vmatpush2.msra.mxu0 0.0
        %828 = vmatprep.subr.mxu0 0.0
        %829 = vmatpush2.msra.mxu0 0.0
        %830 = vmatprep.subr.mxu0 0.0
        %831 = vmatpush2.msra.mxu0 0.0
        %832 = vmatprep.subr.mxu0 0.0
        %833 = vmatpush2.msra.mxu0 0.0
        %834 = vmatprep.subr.mxu0 0.0
        %835 = vmatpush2.msra.mxu0 0.0
        %836 = vmatprep.subr.mxu0 0.0
        %837 = vmatpush2.msra.mxu0 0.0
        %838 = vmatprep.subr.mxu0 0.0
        %839 = vmatpush2.msra.mxu0 0.0
        %840 = vmatprep.mubr.f32.mxu0 0.0
        %841 = vmatmul.mubr.f32.gmra.mxu0 %v774
        %v842 = vpop.f32.mrf.mxu0
        %v843 = vadd.f32 0.0, %v842
        %v844 = vpop.f32.mrf.mxu0
        %845 = vdwg.mxu0
        %v846 = vadd.f32 %v762, %v843
        %s847 = scalar_lea.vmem [#allocation2], 512
        %v848 = vld [vmem:[%s847] sm:$0xff]
        %v849 = vld [vmem:[%s847 + $0x8] sm:$0xff]
        %v850 = vld [vmem:[%s847 + $0x10] sm:$0xff]
        %v851 = vld [vmem:[%s847 + $0x18] sm:$0xff]
        %v852 = vld [vmem:[%s847 + $0x20] sm:$0xff]
        %v853 = vld [vmem:[%s847 + $0x28] sm:$0xff]
        %v854 = vld [vmem:[%s847 + $0x30] sm:$0xff]
        %v855 = vld [vmem:[%s847 + $0x38] sm:$0xff]
        %856 = vrot.lane.b32.xlu0 %v679, 120
        %v857 = vpop.permute.xlu0 %856
        %v858 = vsel %vm194, %v857, 0
        %860 = vmatprep.subr.mxu0 0.0
        %861 = vmatpush1.msra.mxu0 0.0
        %862 = vmatprep.subr.mxu0 0.0
        %863 = vmatpush1.msra.mxu0 0.0
        %864 = vmatprep.subr.mxu0 0.0
        %865 = vmatpush1.msra.mxu0 0.0
        %866 = vmatprep.subr.mxu0 0.0
        %867 = vmatpush1.msra.mxu0 0.0
        %868 = vmatprep.subr.mxu0 0.0
        %869 = vmatpush1.msra.mxu0 0.0
        %870 = vmatprep.subr.mxu0 0.0
        %871 = vmatpush1.msra.mxu0 0.0
        %872 = vmatprep.subr.mxu0 0.0
        %873 = vmatpush1.msra.mxu0 0.0
        %874 = vmatprep.subr.mxu0 0.0
        %875 = vmatpush1.msra.mxu0 0.0
        %876 = vmatprep.subr.mxu0 0.0
        %877 = vmatpush1.msra.mxu0 %v855
        %878 = vmatprep.subr.mxu0 0.0
        %879 = vmatpush1.msra.mxu0 %v854
        %880 = vmatprep.subr.mxu0 0.0
        %881 = vmatpush1.msra.mxu0 %v853
        %882 = vmatprep.subr.mxu0 0.0
        %883 = vmatpush1.msra.mxu0 %v852
        %884 = vmatprep.subr.mxu0 0.0
        %885 = vmatpush1.msra.mxu0 %v851
        %886 = vmatprep.subr.mxu0 0.0
        %887 = vmatpush1.msra.mxu0 %v850
        %888 = vmatprep.subr.mxu0 0.0
        %889 = vmatpush1.msra.mxu0 %v849
        %890 = vmatprep.subr.mxu0 0.0
        %891 = vmatpush1.msra.mxu0 %v848
        %892 = vmatprep.subr.mxu0 0.0
        %893 = vmatpush2.msra.mxu0 0.0
        %894 = vmatprep.subr.mxu0 0.0
        %895 = vmatpush2.msra.mxu0 0.0
        %896 = vmatprep.subr.mxu0 0.0
        %897 = vmatpush2.msra.mxu0 0.0
        %898 = vmatprep.subr.mxu0 0.0
        %899 = vmatpush2.msra.mxu0 0.0
        %900 = vmatprep.subr.mxu0 0.0
        %901 = vmatpush2.msra.mxu0 0.0
        %902 = vmatprep.subr.mxu0 0.0
        %903 = vmatpush2.msra.mxu0 0.0
        %904 = vmatprep.subr.mxu0 0.0
        %905 = vmatpush2.msra.mxu0 0.0
        %906 = vmatprep.subr.mxu0 0.0
        %907 = vmatpush2.msra.mxu0 0.0
        %908 = vmatprep.subr.mxu0 0.0
        %909 = vmatpush2.msra.mxu0 0.0
        %910 = vmatprep.subr.mxu0 0.0
        %911 = vmatpush2.msra.mxu0 0.0
        %912 = vmatprep.subr.mxu0 0.0
        %913 = vmatpush2.msra.mxu0 0.0
        %914 = vmatprep.subr.mxu0 0.0
        %915 = vmatpush2.msra.mxu0 0.0
        %916 = vmatprep.subr.mxu0 0.0
        %917 = vmatpush2.msra.mxu0 0.0
        %918 = vmatprep.subr.mxu0 0.0
        %919 = vmatpush2.msra.mxu0 0.0
        %920 = vmatprep.subr.mxu0 0.0
        %921 = vmatpush2.msra.mxu0 0.0
        %922 = vmatprep.subr.mxu0 0.0
        %923 = vmatpush2.msra.mxu0 0.0
        %924 = vmatprep.mubr.f32.mxu0 0.0
        %925 = vmatmul.mubr.f32.gmra.mxu0 %v858
        %v926 = vpop.f32.mrf.mxu0
        %v927 = vadd.f32 0.0, %v926
        %v928 = vpop.f32.mrf.mxu0
        %929 = vdwg.mxu0
        %v930 = vadd.f32 %v846, %v927
        %931 = vst [vmem:[%s165] sm:$0xff] %v930
        %s932 = sand.u32 %s86, 1
        %s933 = scalar_lea.sflag [#allocation4], %s932
        %s934 = sand.u32 %s86, 1
        %s935 = smul.addr %s934, 8
        %s936 = scalar_lea.vmem [#allocation5], %s935
        // Predicated region
        $region33: #{tpu_custom_call.1} parent=27 // pred_check
          %p937 = pneg %p96
        $region34: #{tpu_custom_call.1} parent=27 // pred_check_branch
          %939 = sbr.rel (%p937) target = $region36
        $region35: #{tpu_custom_call.1} parent=27 // pred_region
          %s941 = ssub.s32 128, 128
          %942 = vsyncadd %s933, %s941
          %s943 = smul.addr %s21, 2
          %s944 = sadd.s32 %s22, %s943
          %s945 = smul.addr %s944, 128
          %s946 = scalar_lea.hbm %s2, %s945
          %s948 = sshll.u32 %s936, 4
          %s949 = int_to_ptr.vmem [resolvable:$true] %s948
          %951 = dma.vmem_to_hbm [thread:$0]  %s949, 128, %s946, %s933
        $region36: #{tpu_custom_call.1} parent=27 // pred_fallthru
          _
      $region28: #{tpu_custom_call.1} parent=5 // pred_fallthru
        _
      %p952 = scmp.le.s32.totalorder 2, %s12
      // Predicated region
      $region37: #{tpu_custom_call.1} parent=5 // pred_check
        %p953 = pneg %p952
      $region38: #{tpu_custom_call.1} parent=5 // pred_check_branch
        %955 = sbr.rel (%p953) target = $region40
      $region39: #{tpu_custom_call.1} parent=5 // pred_region
        %s956 = ssub.s32 %s12, 2
        // Predicated region
        $region41: #{tpu_custom_call.1} parent=39 // pred_check
          %p957 = pneg %p102
        $region42: #{tpu_custom_call.1} parent=39 // pred_check_branch
          %959 = sbr.rel (%p957) target = $region44
        $region43: #{tpu_custom_call.1} parent=39 // pred_region
          %s960 = sand.u32 %s87, 1
          %s961 = scalar_lea.sflag [#allocation4], %s960
          %s962 = sand.u32 %s87, 1
          %s963 = smul.addr %s962, 8
          %s964 = scalar_lea.vmem [#allocation5], %s963
          %965 = dma.done %s961, 128
        $region44: #{tpu_custom_call.1} parent=39 // pred_fallthru
          _
      $region40: #{tpu_custom_call.1} parent=5 // pred_fallthru
        _
    $region6: #{tpu_custom_call.1} parent=1 // loop_footer
      %s16 = sadd.s32 1, %s12
    $region7: #{tpu_custom_call.1} parent=1 // loop_footer_branch
      %11 = sbr.rel target = $region3
    $region8: #{tpu_custom_call.1} parent=1 // loop_exit
      _
    %966 = vsyncpa [#allocation3], 1
    %s967 = scalar_lea.sflag [#allocation3], 1
    %968 = vsyncpa %s967, 1
    %969 = vsyncpa [#allocation4], 1
    %s970 = scalar_lea.sflag [#allocation4], 1
    %971 = vsyncpa %s970, 1

</llo_original>
